<compile_context>
chip_gen: v6e
topology: v6e:2x2x1
jax: 0.10.0
libtpu: 0.0.40
codegen_flags: <defaults>
</compile_context>

<pallas_src>
import jax
import jax.numpy as jnp
from jax.experimental import pallas as pl
from jax.experimental.pallas import tpu as pltpu

LOG_STD_MAX = 2.0
LOG_STD_MIN = -5.0
# Folded rescale constants: log_std = MID + HALF * tanh(z)
LOG_STD_MID = 0.5 * (LOG_STD_MAX + LOG_STD_MIN)   # -1.5
LOG_STD_HALF = 0.5 * (LOG_STD_MAX - LOG_STD_MIN)  # 3.5

HIDDEN = 256          # fixed by the module definition
LANE = 128
OBS_PAD_GRANULE = 32  # bf16 sublane granule x2: W1 becomes a clean (32,256) tile
TM_MAX = 1024         # per-tile buffers at 1024 rows are ~3-4 MiB << 16 MiB limit


def _round_up(x, m):
    return (x + m - 1) // m * m


def _pick_tm(B):
    """Batch-tile size policy (perf feedback):
      * B <= 16: single tile (step overhead dominates; nothing to shard).
      * otherwise: >= 2 tiles so v7x megacore gets both cores busy, tiles
        capped at TM_MAX, sized from ceil(B/n_tiles) so batch padding is tiny.
    """
    if B <= 16:
        return _round_up(max(B, 8), 8)
    n_tiles = max(2, pl.cdiv(B, TM_MAX))
    return _round_up(pl.cdiv(B, n_tiles), 16)   # 16-row granule (bf16 output tiles)


def actor_kernel(x_ref, w1_ref, b1_ref, w2_ref, b2_ref, wh_ref, bh_ref,
                 mask_ref, out_ref):
    # fc1 + relu (bf16 matmul inputs, f32 accumulate / bias / relu)
    x = x_ref[...].astype(w1_ref.dtype)
    h1 = jnp.dot(x, w1_ref[...], preferred_element_type=jnp.float32) + b1_ref[...]
    h1 = jnp.maximum(h1, 0.0).astype(w2_ref.dtype)      # bf16 right after ReLU

    # fc2 + relu
    h2 = jnp.dot(h1, w2_ref[...], preferred_element_type=jnp.float32) + b2_ref[...]
    h2 = jnp.maximum(h2, 0.0).astype(wh_ref.dtype)       # bf16 right after ReLU

    # Fused heads: cols [0, n_act) = mean, [n_act, 2*n_act) = log_std
    # pre-activation, remaining cols are zero padding (lane-dense output).
    head = jnp.dot(h2, wh_ref[...], preferred_element_type=jnp.float32) + bh_ref[...]

    rescaled = LOG_STD_MID + LOG_STD_HALF * jnp.tanh(head)   # tanh -> EUP slot
    m = mask_ref[...]                                         # (1, head_pad) f32, 1.0 on log_std cols
    out_ref[...] = (head + m * (rescaled - head)).astype(out_ref.dtype)


def pack_params(raw_params, n_obs, n_act, weight_dtype=jnp.bfloat16):
    """Pack raw (f32) Linear params into the kernel layout.

    * fc1 weight zero-padded along the input axis to a 32-multiple.
    * heads concatenated along the output axis and zero-padded to the 128-lane
      width; a (1, head_pad) f32 column mask marks the log_std columns.
    * weights cast to bf16 (set weight_dtype=jnp.float32 for exact f32 parity
      at reduced MXU throughput), biases stay f32.
    """
    w1, b1, w2, b2, wm, bm, wl, bl = raw_params
    n_obs_pad = _round_up(n_obs, OBS_PAD_GRANULE)
    head_pad = max(LANE, _round_up(2 * n_act, LANE))

    w1p = jnp.zeros((n_obs_pad, HIDDEN), jnp.float32).at[:n_obs, :].set(w1)

    wh = jnp.zeros((HIDDEN, head_pad), jnp.float32)
    wh = wh.at[:, :n_act].set(wm).at[:, n_act:2 * n_act].set(wl)
    bh = jnp.zeros((1, head_pad), jnp.float32)
    bh = bh.at[:, :n_act].set(bm[0]).at[:, n_act:2 * n_act].set(bl[0])

    col = jnp.arange(head_pad)
    mask = ((col >= n_act) & (col < 2 * n_act)).astype(jnp.float32)[None, :]

    return (w1p.astype(weight_dtype), b1,
            w2.astype(weight_dtype), b2,
            wh.astype(weight_dtype), bh,
            mask)


def actor_forward(x, packed_params, n_act, *, out_dtype=jnp.bfloat16):
    """x: (B, n_obs) float32. Returns (mean, log_std) as f32, each (B, n_act)."""
    w1, b1, w2, b2, wh, bh, mask = packed_params
    B, n_obs = x.shape
    n_obs_pad = w1.shape[0]
    head_pad = wh.shape[1]

    tm = _pick_tm(B)
    B_pad = _round_up(B, tm)
    if B_pad != B or n_obs_pad != n_obs:
        x = jnp.pad(x, ((0, B_pad - B), (0, n_obs_pad - n_obs)))
    grid = (B_pad // tm,)

    # Weights/biases/mask: constant block index -> fetched once, VMEM-resident
    # across all batch tiles (~0.3 MB total in bf16).
    def resident(shape):
        return pl.BlockSpec(shape, lambda i: (0,) * len(shape))

    out = pl.pallas_call(
        actor_kernel,
        out_shape=jax.ShapeDtypeStruct((B_pad, head_pad), out_dtype),
        grid=grid,
        in_specs=[
            pl.BlockSpec((tm, n_obs_pad), lambda i: (i, 0)),   # x: tiled over batch
            resident(w1.shape), resident(b1.shape),
            resident(w2.shape), resident(b2.shape),
            resident(wh.shape), resident(bh.shape),
            resident(mask.shape),
        ],
        out_specs=pl.BlockSpec((tm, head_pad), lambda i: (i, 0)),
        compiler_params=pltpu.CompilerParams(
            dimension_semantics=("parallel",),   # megacore batch split on v7x
            vmem_limit_bytes=16 << 20,
        ),
    )(x, w1, b1, w2, b2, wh, bh, mask)

    out = out.astype(jnp.float32)
    mean = out[:B, :n_act]
    log_std = out[:B, n_act:2 * n_act]
    return mean, log_std


def init_params(key, n_obs, n_act):
    """Deterministic synthetic init (PyTorch-Linear-style uniform fan-in bounds)."""
    ks = jax.random.split(key, 8)

    def linear(kw, kb, fan_in, fan_out):
        bound = 1.0 / jnp.sqrt(jnp.float32(fan_in))
        w = jax.random.uniform(kw, (fan_in, fan_out), jnp.float32, -bound, bound)
        b = jax.random.uniform(kb, (1, fan_out), jnp.float32, -bound, bound)
        return w, b

    w1, b1 = linear(ks[0], ks[1], n_obs, HIDDEN)
    w2, b2 = linear(ks[2], ks[3], HIDDEN, HIDDEN)
    wm, bm = linear(ks[4], ks[5], HIDDEN, n_act)
    wl, bl = linear(ks[6], ks[7], HIDDEN, n_act)
    return (w1, b1, w2, b2, wm, bm, wl, bl)


def reference_forward(x, raw_params, weight_dtype=jnp.bfloat16):
    """Pure-JAX reference using the same bf16-weight / f32-accumulate path."""
    w1, b1, w2, b2, wm, bm, wl, bl = raw_params
    cast = lambda a: a.astype(weight_dtype)
    h1 = jnp.maximum(
        jnp.dot(cast(x), cast(w1), preferred_element_type=jnp.float32) + b1, 0.0)
    h2 = jnp.maximum(
        jnp.dot(cast(h1), cast(w2), preferred_element_type=jnp.float32) + b2, 0.0)
    mean = jnp.dot(cast(h2), cast(wm), preferred_element_type=jnp.float32) + bm
    z = jnp.dot(cast(h2), cast(wl), preferred_element_type=jnp.float32) + bl
    log_std = LOG_STD_MIN + 0.5 * (LOG_STD_MAX - LOG_STD_MIN) * (jnp.tanh(z) + 1.0)
    return mean, log_std


if __name__ == "__main__":
    # BipedalWalker-v3: n_obs = 24, n_act = 4.
    B, N_OBS, N_ACT = 2, 24, 4

    key = jax.random.PRNGKey(0)
    kx, kp = jax.random.split(key)

    x = jax.random.normal(kx, (B, N_OBS), jnp.float32)
    raw_params = init_params(kp, N_OBS, N_ACT)
    packed = pack_params(raw_params, N_OBS, N_ACT)

    mean, log_std = jax.block_until_ready(actor_forward(x, packed, N_ACT))

    mean_ref, log_std_ref = reference_forward(x, raw_params)
    assert mean.shape == (B, N_ACT) and log_std.shape == (B, N_ACT)
    # bf16 output store adds up to ~1 bf16 ulp (~0.4% rel) on top of the
    # bf16-weight / f32-accumulate math.
    assert jnp.allclose(mean, mean_ref, atol=2e-2, rtol=1e-2)
    assert jnp.allclose(log_std, log_std_ref, atol=2e-2, rtol=1e-2)
    # log_std must lie in [LOG_STD_MIN, LOG_STD_MAX]
    assert bool(jnp.all(log_std >= LOG_STD_MIN)) and bool(jnp.all(log_std <= LOG_STD_MAX))

    print("KERNEL_OK")
</pallas_src>

<mosaic_0001>
module attributes {stable_mosaic.version = 11 : i64} {
  func.func @actor_kernel(%arg0: i32, %arg1: memref<8x32xf32, #tpu.memory_space<vmem>>, %arg2: memref<32x256xbf16, #tpu.memory_space<vmem>>, %arg3: memref<1x256xf32, #tpu.memory_space<vmem>>, %arg4: memref<256x256xbf16, #tpu.memory_space<vmem>>, %arg5: memref<1x256xf32, #tpu.memory_space<vmem>>, %arg6: memref<256x128xbf16, #tpu.memory_space<vmem>>, %arg7: memref<1x128xf32, #tpu.memory_space<vmem>>, %arg8: memref<1x128xf32, #tpu.memory_space<vmem>>, %arg9: memref<8x128xbf16, #tpu.memory_space<vmem>>) attributes {dimension_semantics = [#tpu.dimension_semantics<parallel>], iteration_bounds = array<i64: 1>, scalar_prefetch = 0 : i64, scratch_operands = 0 : i64, tpu.core_type = #tpu.core_type<tc>, window_params = [{transform_indices = @transform_0, window_bounds = array<i64: 8, 32>}, {pipeline_mode = #tpu.pipeline_mode<synchronous>, transform_indices = @transform_1, window_bounds = array<i64: 32, 256>}, {pipeline_mode = #tpu.pipeline_mode<synchronous>, transform_indices = @transform_2, window_bounds = array<i64: 1, 256>}, {pipeline_mode = #tpu.pipeline_mode<synchronous>, transform_indices = @transform_3, window_bounds = array<i64: 256, 256>}, {pipeline_mode = #tpu.pipeline_mode<synchronous>, transform_indices = @transform_4, window_bounds = array<i64: 1, 256>}, {pipeline_mode = #tpu.pipeline_mode<synchronous>, transform_indices = @transform_5, window_bounds = array<i64: 256, 128>}, {pipeline_mode = #tpu.pipeline_mode<synchronous>, transform_indices = @transform_6, window_bounds = array<i64: 1, 128>}, {pipeline_mode = #tpu.pipeline_mode<synchronous>, transform_indices = @transform_7, window_bounds = array<i64: 1, 128>}, {transform_indices = @transform_8, window_bounds = array<i64: 8, 128>}]} {
    %c0 = arith.constant 0 : index
    %c0_0 = arith.constant 0 : index
    %0 = vector.load %arg1[%c0, %c0_0] : memref<8x32xf32, #tpu.memory_space<vmem>>, vector<8x32xf32>
    %1 = arith.truncf %0 : vector<8x32xf32> to vector<8x32xbf16>
    %c0_1 = arith.constant 0 : index
    %c0_2 = arith.constant 0 : index
    %2 = vector.load %arg2[%c0_1, %c0_2] : memref<32x256xbf16, #tpu.memory_space<vmem>>, vector<32x256xbf16>
    %cst = arith.constant dense<0.000000e+00> : vector<8x256xf32>
    %3 = tpu.matmul %1, %2, %cst {dimension_numbers = #tpu.dot_dimension_numbers<[1], [0], [0], [1], [0, 0, 1, 1], [], []>} : vector<8x32xbf16>, vector<32x256xbf16>, vector<8x256xf32> -> vector<8x256xf32>
    %c0_3 = arith.constant 0 : index
    %c0_4 = arith.constant 0 : index
    %4 = vector.load %arg3[%c0_3, %c0_4] : memref<1x256xf32, #tpu.memory_space<vmem>>, vector<1x256xf32>
    %5 = vector.broadcast %4 : vector<1x256xf32> to vector<8x256xf32>
    %6 = arith.addf %3, %5 : vector<8x256xf32>
    %cst_5 = arith.constant 0.000000e+00 : f32
    %7 = vector.broadcast %cst_5 : f32 to vector<8x256xf32>
    %8 = arith.maximumf %6, %7 : vector<8x256xf32>
    %9 = arith.truncf %8 : vector<8x256xf32> to vector<8x256xbf16>
    %c0_6 = arith.constant 0 : index
    %c0_7 = arith.constant 0 : index
    %10 = vector.load %arg4[%c0_6, %c0_7] : memref<256x256xbf16, #tpu.memory_space<vmem>>, vector<256x256xbf16>
    %cst_8 = arith.constant dense<0.000000e+00> : vector<8x256xf32>
    %11 = tpu.matmul %9, %10, %cst_8 {dimension_numbers = #tpu.dot_dimension_numbers<[1], [0], [0], [1], [0, 0, 1, 1], [], []>} : vector<8x256xbf16>, vector<256x256xbf16>, vector<8x256xf32> -> vector<8x256xf32>
    %c0_9 = arith.constant 0 : index
    %c0_10 = arith.constant 0 : index
    %12 = vector.load %arg5[%c0_9, %c0_10] : memref<1x256xf32, #tpu.memory_space<vmem>>, vector<1x256xf32>
    %13 = vector.broadcast %12 : vector<1x256xf32> to vector<8x256xf32>
    %14 = arith.addf %11, %13 : vector<8x256xf32>
    %cst_11 = arith.constant 0.000000e+00 : f32
    %15 = vector.broadcast %cst_11 : f32 to vector<8x256xf32>
    %16 = arith.maximumf %14, %15 : vector<8x256xf32>
    %17 = arith.truncf %16 : vector<8x256xf32> to vector<8x256xbf16>
    %c0_12 = arith.constant 0 : index
    %c0_13 = arith.constant 0 : index
    %18 = vector.load %arg6[%c0_12, %c0_13] : memref<256x128xbf16, #tpu.memory_space<vmem>>, vector<256x128xbf16>
    %cst_14 = arith.constant dense<0.000000e+00> : vector<8x128xf32>
    %19 = tpu.matmul %17, %18, %cst_14 {dimension_numbers = #tpu.dot_dimension_numbers<[1], [0], [0], [1], [0, 0, 1, 1], [], []>} : vector<8x256xbf16>, vector<256x128xbf16>, vector<8x128xf32> -> vector<8x128xf32>
    %c0_15 = arith.constant 0 : index
    %c0_16 = arith.constant 0 : index
    %20 = vector.load %arg7[%c0_15, %c0_16] : memref<1x128xf32, #tpu.memory_space<vmem>>, vector<1x128xf32>
    %21 = vector.broadcast %20 : vector<1x128xf32> to vector<8x128xf32>
    %22 = arith.addf %19, %21 : vector<8x128xf32>
    %23 = math.tanh %22 : vector<8x128xf32>
    %cst_17 = arith.constant 3.500000e+00 : f32
    %24 = vector.broadcast %cst_17 : f32 to vector<8x128xf32>
    %25 = arith.mulf %24, %23 : vector<8x128xf32>
    %cst_18 = arith.constant -1.500000e+00 : f32
    %26 = vector.broadcast %cst_18 : f32 to vector<8x128xf32>
    %27 = arith.addf %26, %25 : vector<8x128xf32>
    %c0_19 = arith.constant 0 : index
    %c0_20 = arith.constant 0 : index
    %28 = vector.load %arg8[%c0_19, %c0_20] : memref<1x128xf32, #tpu.memory_space<vmem>>, vector<1x128xf32>
    %29 = arith.subf %27, %22 : vector<8x128xf32>
    %30 = vector.broadcast %28 : vector<1x128xf32> to vector<8x128xf32>
    %31 = arith.mulf %30, %29 : vector<8x128xf32>
    %32 = arith.addf %22, %31 : vector<8x128xf32>
    %33 = arith.truncf %32 : vector<8x128xf32> to vector<8x128xbf16>
    %c0_21 = arith.constant 0 : index
    %c0_22 = arith.constant 0 : index
    %34 = vector.load %arg9[%c0_21, %c0_22] : memref<8x128xbf16, #tpu.memory_space<vmem>>, vector<8x128xbf16>
    tpu.vector_store %arg9[%c0_21, %c0_22], %33 {strides = array<i32>} : memref<8x128xbf16, #tpu.memory_space<vmem>>, vector<8x128xbf16>,
    return
  }
  func.func @transform_0(%arg0: i32) -> (i32, i32) {
    %c0_i32 = arith.constant 0 : i32
    %c0_i32_0 = arith.constant 0 : i32
    return %arg0, %c0_i32 : i32, i32
  }
  func.func @transform_1(%arg0: i32) -> (i32, i32) {
    %c0_i32 = arith.constant 0 : i32
    %c0_i32_0 = arith.constant 0 : i32
    %c0_i32_1 = arith.constant 0 : i32
    return %c0_i32, %c0_i32_0 : i32, i32
  }
  func.func @transform_2(%arg0: i32) -> (i32, i32) {
    %c0_i32 = arith.constant 0 : i32
    %c0_i32_0 = arith.constant 0 : i32
    %c0_i32_1 = arith.constant 0 : i32
    return %c0_i32, %c0_i32_0 : i32, i32
  }
  func.func @transform_3(%arg0: i32) -> (i32, i32) {
    %c0_i32 = arith.constant 0 : i32
    %c0_i32_0 = arith.constant 0 : i32
    %c0_i32_1 = arith.constant 0 : i32
    return %c0_i32, %c0_i32_0 : i32, i32
  }
  func.func @transform_4(%arg0: i32) -> (i32, i32) {
    %c0_i32 = arith.constant 0 : i32
    %c0_i32_0 = arith.constant 0 : i32
    %c0_i32_1 = arith.constant 0 : i32
    return %c0_i32, %c0_i32_0 : i32, i32
  }
  func.func @transform_5(%arg0: i32) -> (i32, i32) {
    %c0_i32 = arith.constant 0 : i32
    %c0_i32_0 = arith.constant 0 : i32
    %c0_i32_1 = arith.constant 0 : i32
    return %c0_i32, %c0_i32_0 : i32, i32
  }
  func.func @transform_6(%arg0: i32) -> (i32, i32) {
    %c0_i32 = arith.constant 0 : i32
    %c0_i32_0 = arith.constant 0 : i32
    %c0_i32_1 = arith.constant 0 : i32
    return %c0_i32, %c0_i32_0 : i32, i32
  }
  func.func @transform_7(%arg0: i32) -> (i32, i32) {
    %c0_i32 = arith.constant 0 : i32
    %c0_i32_0 = arith.constant 0 : i32
    %c0_i32_1 = arith.constant 0 : i32
    return %c0_i32, %c0_i32_0 : i32, i32
  }
  func.func @transform_8(%arg0: i32) -> (i32, i32) {
    %c0_i32 = arith.constant 0 : i32
    %c0_i32_0 = arith.constant 0 : i32
    return %arg0, %c0_i32 : i32, i32
  }
}

</mosaic_0001>

<llo_original>
// kernel: tpu_custom_call.1
$region0: #{tpu_custom_call.1}
  #allocation0 [shape = 'u32[]', space=smem, size = 0x4, offset = 0x4, fixed_abs, tag = 'smem constant byte address 0x4 - core index']
  #allocation1 [shape = 'u32[144,128]{1,0:T(1,128)}', space=vmem, size = 0x12000, scoped, tag = 'internal scratch']
  %s0 = inlined_call_operand.hbm [shape: f32[8,32], index: 0, kind: input, shape index: {}]
  %s1 = inlined_call_operand.hbm [shape: bf16[32,256], index: 1, kind: input, shape index: {}]
  %s2 = inlined_call_operand.vmem [shape: f32[1,256], index: 2, kind: input, shape index: {}]
  %s3 = inlined_call_operand.hbm [shape: bf16[256,256], index: 3, kind: input, shape index: {}]
  %s4 = inlined_call_operand.vmem [shape: f32[1,256], index: 4, kind: input, shape index: {}]
  %s5 = inlined_call_operand.hbm [shape: bf16[256,128], index: 5, kind: input, shape index: {}]
  %s6 = inlined_call_operand.vmem [shape: f32[1,128], index: 6, kind: input, shape index: {}]
  %s7 = inlined_call_operand.vmem [shape: f32[1,128], index: 7, kind: input, shape index: {}]
  %s8 = inlined_call_operand.hbm [shape: bf16[8,128], index: 8, kind: output, shape index: {}]
  %s9 = sld [smem:[#allocation0]]
  $region58: #{tpu_custom_call.1} parent=0
    _
  %s11 = ssub.s32 1, %s9
  %s12 = scalar_select 0, %s11, %s9
  $region1: #{tpu_custom_call.1} parent=0
    #allocation2 [shape = 'u8[4096]{0}', space=vmem, size = 0x1000, scoped, tag = 'input window, operand 0, single buffered']
    #allocation3 [shape = 's32[1]{0}', space=sflag, size = 0x4, scoped, tag = 'scoped memory for tpu_custom_call.1']
    #allocation4 [shape = 's32[1]{0}', space=sflag, size = 0x4, scoped, tag = 'scoped memory for tpu_custom_call.1']
    #allocation5 [shape = 'u8[16384]{0}', space=vmem, size = 0x4000, scoped, tag = 'input window, operand 1, single buffered']
    #allocation6 [shape = 's32[1]{0}', space=sflag, size = 0x4, scoped, tag = 'scoped memory for tpu_custom_call.1']
    #allocation7 [shape = 'u8[131072]{0}', space=vmem, size = 0x20000, scoped, tag = 'input window, operand 3, single buffered']
    #allocation8 [shape = 'u8[65536]{0}', space=vmem, size = 0x10000, scoped, tag = 'input window, operand 5, single buffered']
    #allocation9 [shape = 's32[1]{0}', space=sflag, size = 0x4, scoped, tag = 'scoped memory for tpu_custom_call.1']
    #allocation10 [shape = 'u8[2048]{0}', space=vmem, size = 0x800, scoped, tag = 'output window, operand 0, single buffered']
    %13 = vsyncpa [#allocation3], 0
    %14 = vsyncpa [#allocation6], 0
    %15 = vsyncpa [#allocation9], 0
    %16 = vsyncpa [#allocation4], 0
    // Predicated region
    $region2: #{tpu_custom_call.1} parent=1 // pred_check
      _
    $region3: #{tpu_custom_call.1} parent=1 // pred_check_branch
      %18 = sbr.rel (0) target = $region5
    $region4: #{tpu_custom_call.1} parent=1 // pred_region
      %s20 = ssub.s32 128, 128
      %21 = vsyncadd [#allocation3], %s20
      %s23 = sshll.u32 [#allocation2], 4
      %s24 = int_to_ptr.vmem [resolvable:$true] %s23
      %26 = dma.hbm_to_vmem [thread:$0]  %s0, 128, %s24, [#allocation3]
    $region5: #{tpu_custom_call.1} parent=1 // pred_fallthru
      _
    // Predicated region
    $region6: #{tpu_custom_call.1} parent=1 // pred_check
      _
    $region7: #{tpu_custom_call.1} parent=1 // pred_check_branch
      %28 = sbr.rel (0) target = $region9
    $region8: #{tpu_custom_call.1} parent=1 // pred_region
      %s30 = ssub.s32 512, 512
      %31 = vsyncadd [#allocation6], %s30
      %s32 = sshll.u32 [#allocation5], 4
      %s33 = int_to_ptr.vmem [resolvable:$true] %s32
      %38 = dma.hbm_to_vmem [thread:$0]  %s1, 512, %s33, [#allocation6], 128, 128, 8
    $region9: #{tpu_custom_call.1} parent=1 // pred_fallthru
      _
    // Predicated region
    $region10: #{tpu_custom_call.1} parent=1 // pred_check
      _
    $region11: #{tpu_custom_call.1} parent=1 // pred_check_branch
      %40 = sbr.rel (0) target = $region13
    $region12: #{tpu_custom_call.1} parent=1 // pred_region
      _
    $region13: #{tpu_custom_call.1} parent=1 // pred_fallthru
      _
    // Predicated region
    $region14: #{tpu_custom_call.1} parent=1 // pred_check
      _
    $region15: #{tpu_custom_call.1} parent=1 // pred_check_branch
      %42 = sbr.rel (0) target = $region17
    $region16: #{tpu_custom_call.1} parent=1 // pred_region
      %s44 = ssub.s32 4096, 4096
      %45 = vsyncadd [#allocation6], %s44
      %s46 = sshll.u32 [#allocation7], 4
      %s47 = int_to_ptr.vmem [resolvable:$true] %s46
      %52 = dma.hbm_to_vmem [thread:$0]  %s3, 4096, %s47, [#allocation6], 128, 128, 8
    $region17: #{tpu_custom_call.1} parent=1 // pred_fallthru
      _
    // Predicated region
    $region18: #{tpu_custom_call.1} parent=1 // pred_check
      _
    $region19: #{tpu_custom_call.1} parent=1 // pred_check_branch
      %54 = sbr.rel (0) target = $region21
    $region20: #{tpu_custom_call.1} parent=1 // pred_region
      _
    $region21: #{tpu_custom_call.1} parent=1 // pred_fallthru
      _
    // Predicated region
    $region22: #{tpu_custom_call.1} parent=1 // pred_check
      _
    $region23: #{tpu_custom_call.1} parent=1 // pred_check_branch
      %56 = sbr.rel (0) target = $region25
    $region24: #{tpu_custom_call.1} parent=1 // pred_region
      %s58 = ssub.s32 2048, 2048
      %59 = vsyncadd [#allocation9], %s58
      %s60 = sshll.u32 [#allocation8], 4
      %s61 = int_to_ptr.vmem [resolvable:$true] %s60
      %66 = dma.hbm_to_vmem [thread:$0]  %s5, 2048, %s61, [#allocation9], 64, 64, 4
    $region25: #{tpu_custom_call.1} parent=1 // pred_fallthru
      _
    // Predicated region
    $region26: #{tpu_custom_call.1} parent=1 // pred_check
      _
    $region27: #{tpu_custom_call.1} parent=1 // pred_check_branch
      %68 = sbr.rel (0) target = $region29
    $region28: #{tpu_custom_call.1} parent=1 // pred_region
      _
    $region29: #{tpu_custom_call.1} parent=1 // pred_fallthru
      _
    // Predicated region
    $region30: #{tpu_custom_call.1} parent=1 // pred_check
      _
    $region31: #{tpu_custom_call.1} parent=1 // pred_check_branch
      %70 = sbr.rel (0) target = $region33
    $region32: #{tpu_custom_call.1} parent=1 // pred_region
      _
    $region33: #{tpu_custom_call.1} parent=1 // pred_fallthru
      _
    // Predicated region
    $region34: #{tpu_custom_call.1} parent=1 // pred_check
      _
    $region35: #{tpu_custom_call.1} parent=1 // pred_check_branch
      %72 = sbr.rel (0) target = $region37
    $region36: #{tpu_custom_call.1} parent=1 // pred_region
      %73 = dma.done [#allocation3], 128
    $region37: #{tpu_custom_call.1} parent=1 // pred_fallthru
      _
    // Predicated region
    $region38: #{tpu_custom_call.1} parent=1 // pred_check
      _
    $region39: #{tpu_custom_call.1} parent=1 // pred_check_branch
      %75 = sbr.rel (0) target = $region41
    $region40: #{tpu_custom_call.1} parent=1 // pred_region
      %76 = dma.done [#allocation6], 512
    $region41: #{tpu_custom_call.1} parent=1 // pred_fallthru
      _
    // Predicated region
    $region42: #{tpu_custom_call.1} parent=1 // pred_check
      _
    $region43: #{tpu_custom_call.1} parent=1 // pred_check_branch
      %78 = sbr.rel (0) target = $region45
    $region44: #{tpu_custom_call.1} parent=1 // pred_region
      %79 = dma.done [#allocation6], 4096
    $region45: #{tpu_custom_call.1} parent=1 // pred_fallthru
      _
    // Predicated region
    $region46: #{tpu_custom_call.1} parent=1 // pred_check
      _
    $region47: #{tpu_custom_call.1} parent=1 // pred_check_branch
      %81 = sbr.rel (0) target = $region49
    $region48: #{tpu_custom_call.1} parent=1 // pred_region
      %82 = dma.done [#allocation9], 2048
    $region49: #{tpu_custom_call.1} parent=1 // pred_fallthru
      _
    %v84 = vld [vmem:[#allocation2] sm:$0xff]
    %v85 = vpack.c.bf16 %v84, %v84
    %v86 = vld [vmem:[#allocation5] sm:$0xff]
    %v87 = vld [vmem:[#allocation5 + $0x8] sm:$0xff]
    %v88 = vld [vmem:[#allocation5 + $0x10] sm:$0xff]
    %v89 = vld [vmem:[#allocation5 + $0x18] sm:$0xff]
    %v90 = vld [vmem:[%s2] sm:$0x3]
    %v92 = vlaneseq
    %v93 = vshrl.u32 %v92, 7
    %v94 = vsub.s32 0, %v93
    %v95 = vrot.slane %v90, %v94
    %v96 = vlaneseq
    %v97 = vshrl.u32 %v96, 7
    %v98 = vsub.s32 1, %v97
    %v99 = vrot.slane %v90, %v98
    %v106 = vunpack.c.l.b16 %v86
    %v107 = vunpack.c.h.b16 %v86
    %v108 = vunpack.c.l.b16 %v87
    %v109 = vunpack.c.h.b16 %v87
    %v110 = vunpack.c.l.b16 %v88
    %v111 = vunpack.c.h.b16 %v88
    %v112 = vunpack.c.l.b16 %v89
    %v113 = vunpack.c.h.b16 %v89
    %v114 = vpack.c.b16 %v108, %v106
    %v115 = vpack.c.b16 %v109, %v107
    %v116 = vpack.c.b16 %v112, %v110
    %v117 = vpack.c.b16 %v113, %v111
    %vm122 = vcmask 261120
    %v124 = vsel %vm122, %v85, 0
    %126 = vmatprep.subr.bf16.mxu0 0
    %127 = vmatpush1.bf16.msra.mxu0 0
    %128 = vmatprep.subr.bf16.mxu0 0
    %129 = vmatpush1.bf16.msra.mxu0 0
    %130 = vmatprep.subr.bf16.mxu0 0
    %131 = vmatpush1.bf16.msra.mxu0 0
    %132 = vmatprep.subr.bf16.mxu0 0
    %133 = vmatpush1.bf16.msra.mxu0 0
    %134 = vmatprep.subr.bf16.mxu0 0
    %135 = vmatpush1.bf16.msra.mxu0 0
    %136 = vmatprep.subr.bf16.mxu0 0
    %137 = vmatpush1.bf16.msra.mxu0 0
    %138 = vmatprep.subr.bf16.mxu0 %v117
    %139 = vmatpush1.bf16.msra.mxu0 %v116
    %140 = vmatprep.subr.bf16.mxu0 %v115
    %141 = vmatpush1.bf16.msra.mxu0 %v114
    %142 = vmatprep.subr.bf16.mxu0 0
    %143 = vmatpush2.bf16.msra.mxu0 0
    %144 = vmatprep.subr.bf16.mxu0 0
    %145 = vmatpush2.bf16.msra.mxu0 0
    %146 = vmatprep.subr.bf16.mxu0 0
    %147 = vmatpush2.bf16.msra.mxu0 0
    %148 = vmatprep.subr.bf16.mxu0 0
    %149 = vmatpush2.bf16.msra.mxu0 0
    %150 = vmatprep.subr.bf16.mxu0 0
    %151 = vmatpush2.bf16.msra.mxu0 0
    %152 = vmatprep.subr.bf16.mxu0 0
    %153 = vmatpush2.bf16.msra.mxu0 0
    %154 = vmatprep.subr.bf16.mxu0 0
    %155 = vmatpush2.bf16.msra.mxu0 0
    %156 = vmatprep.subr.bf16.mxu0 0
    %157 = vmatpush2.bf16.msra.mxu0 0
    %158 = vmatprep.mubr.bf16.mxu0 0
    %159 = vmatmul.mubr.bf16.gmra.mxu0 %v124
    %v160 = vpop.f32.mrf.mxu0
    %v161 = vadd.f32 %v95, %v160
    %v162 = vpop.f32.mrf.mxu0
    %v163 = vadd.f32 %v99, %v162
    %v164 = vpop.f32.mrf.mxu0
    %v165 = vpop.f32.mrf.mxu0
    %166 = vdwg.mxu0
    %v167 = vmax.f32 %v161, 0.0
    %v168 = vmax.f32 %v163, 0.0
    %v169 = vpack.c.bf16 %v167, %v167
    %v170 = vpack.c.bf16 %v168, %v168
    %v171 = vld [vmem:[#allocation7] sm:$0xff]
    %v172 = vld [vmem:[#allocation7 + $0x8] sm:$0xff]
    %v173 = vld [vmem:[#allocation7 + $0x10] sm:$0xff]
    %v174 = vld [vmem:[#allocation7 + $0x18] sm:$0xff]
    %v175 = vld [vmem:[#allocation7 + $0x20] sm:$0xff]
    %v176 = vld [vmem:[#allocation7 + $0x28] sm:$0xff]
    %v177 = vld [vmem:[#allocation7 + $0x30] sm:$0xff]
    %v178 = vld [vmem:[#allocation7 + $0x38] sm:$0xff]
    %v179 = vld [vmem:[#allocation7 + $0x40] sm:$0xff]
    %v180 = vld [vmem:[#allocation7 + $0x48] sm:$0xff]
    %v181 = vld [vmem:[#allocation7 + $0x50] sm:$0xff]
    %v182 = vld [vmem:[#allocation7 + $0x58] sm:$0xff]
    %v183 = vld [vmem:[#allocation7 + $0x60] sm:$0xff]
    %v184 = vld [vmem:[#allocation7 + $0x68] sm:$0xff]
    %v185 = vld [vmem:[#allocation7 + $0x70] sm:$0xff]
    %v186 = vld [vmem:[#allocation7 + $0x78] sm:$0xff]
    %v187 = vld [vmem:[#allocation7 + $0x80] sm:$0xff]
    %v188 = vld [vmem:[#allocation7 + $0x88] sm:$0xff]
    %v189 = vld [vmem:[#allocation7 + $0x90] sm:$0xff]
    %v190 = vld [vmem:[#allocation7 + $0x98] sm:$0xff]
    %v191 = vld [vmem:[#allocation7 + $0xa0] sm:$0xff]
    %v192 = vld [vmem:[#allocation7 + $0xa8] sm:$0xff]
    %v193 = vld [vmem:[#allocation7 + $0xb0] sm:$0xff]
    %v194 = vld [vmem:[#allocation7 + $0xb8] sm:$0xff]
    %v195 = vld [vmem:[#allocation7 + $0xc0] sm:$0xff]
    %v196 = vld [vmem:[#allocation7 + $0xc8] sm:$0xff]
    %v197 = vld [vmem:[#allocation7 + $0xd0] sm:$0xff]
    %v198 = vld [vmem:[#allocation7 + $0xd8] sm:$0xff]
    %v199 = vld [vmem:[#allocation7 + $0xe0] sm:$0xff]
    %v200 = vld [vmem:[#allocation7 + $0xe8] sm:$0xff]
    %v201 = vld [vmem:[#allocation7 + $0xf0] sm:$0xff]
    %v202 = vld [vmem:[#allocation7 + $0xf8] sm:$0xff]
    %v203 = vld [vmem:[%s4] sm:$0x3]
    %v205 = vlaneseq
    %v206 = vshrl.u32 %v205, 7
    %v207 = vsub.s32 0, %v206
    %v208 = vrot.slane %v203, %v207
    %v209 = vlaneseq
    %v210 = vshrl.u32 %v209, 7
    %v211 = vsub.s32 1, %v210
    %v212 = vrot.slane %v203, %v211
    %v247 = vunpack.c.l.b16 %v171
    %v248 = vunpack.c.h.b16 %v171
    %v249 = vunpack.c.l.b16 %v172
    %v250 = vunpack.c.h.b16 %v172
    %v251 = vunpack.c.l.b16 %v173
    %v252 = vunpack.c.h.b16 %v173
    %v253 = vunpack.c.l.b16 %v174
    %v254 = vunpack.c.h.b16 %v174
    %v255 = vunpack.c.l.b16 %v175
    %v256 = vunpack.c.h.b16 %v175
    %v257 = vunpack.c.l.b16 %v176
    %v258 = vunpack.c.h.b16 %v176
    %v259 = vunpack.c.l.b16 %v177
    %v260 = vunpack.c.h.b16 %v177
    %v261 = vunpack.c.l.b16 %v178
    %v262 = vunpack.c.h.b16 %v178
    %v263 = vunpack.c.l.b16 %v179
    %v264 = vunpack.c.h.b16 %v179
    %v265 = vunpack.c.l.b16 %v180
    %v266 = vunpack.c.h.b16 %v180
    %v267 = vunpack.c.l.b16 %v181
    %v268 = vunpack.c.h.b16 %v181
    %v269 = vunpack.c.l.b16 %v182
    %v270 = vunpack.c.h.b16 %v182
    %v271 = vunpack.c.l.b16 %v183
    %v272 = vunpack.c.h.b16 %v183
    %v273 = vunpack.c.l.b16 %v184
    %v274 = vunpack.c.h.b16 %v184
    %v275 = vunpack.c.l.b16 %v185
    %v276 = vunpack.c.h.b16 %v185
    %v277 = vunpack.c.l.b16 %v186
    %v278 = vunpack.c.h.b16 %v186
    %v279 = vunpack.c.l.b16 %v187
    %v280 = vunpack.c.h.b16 %v187
    %v281 = vunpack.c.l.b16 %v188
    %v282 = vunpack.c.h.b16 %v188
    %v283 = vunpack.c.l.b16 %v189
    %v284 = vunpack.c.h.b16 %v189
    %v285 = vunpack.c.l.b16 %v190
    %v286 = vunpack.c.h.b16 %v190
    %v287 = vunpack.c.l.b16 %v191
    %v288 = vunpack.c.h.b16 %v191
    %v289 = vunpack.c.l.b16 %v192
    %v290 = vunpack.c.h.b16 %v192
    %v291 = vunpack.c.l.b16 %v193
    %v292 = vunpack.c.h.b16 %v193
    %v293 = vunpack.c.l.b16 %v194
    %v294 = vunpack.c.h.b16 %v194
    %v295 = vunpack.c.l.b16 %v195
    %v296 = vunpack.c.h.b16 %v195
    %v297 = vunpack.c.l.b16 %v196
    %v298 = vunpack.c.h.b16 %v196
    %v299 = vunpack.c.l.b16 %v197
    %v300 = vunpack.c.h.b16 %v197
    %v301 = vunpack.c.l.b16 %v198
    %v302 = vunpack.c.h.b16 %v198
    %v303 = vunpack.c.l.b16 %v199
    %v304 = vunpack.c.h.b16 %v199
    %v305 = vunpack.c.l.b16 %v200
    %v306 = vunpack.c.h.b16 %v200
    %v307 = vunpack.c.l.b16 %v201
    %v308 = vunpack.c.h.b16 %v201
    %v309 = vunpack.c.l.b16 %v202
    %v310 = vunpack.c.h.b16 %v202
    %v311 = vpack.c.b16 %v249, %v247
    %v312 = vpack.c.b16 %v250, %v248
    %v313 = vpack.c.b16 %v253, %v251
    %v314 = vpack.c.b16 %v254, %v252
    %v315 = vpack.c.b16 %v257, %v255
    %v316 = vpack.c.b16 %v258, %v256
    %v317 = vpack.c.b16 %v261, %v259
    %v318 = vpack.c.b16 %v262, %v260
    %v319 = vpack.c.b16 %v265, %v263
    %v320 = vpack.c.b16 %v266, %v264
    %v321 = vpack.c.b16 %v269, %v267
    %v322 = vpack.c.b16 %v270, %v268
    %v323 = vpack.c.b16 %v273, %v271
    %v324 = vpack.c.b16 %v274, %v272
    %v325 = vpack.c.b16 %v277, %v275
    %v326 = vpack.c.b16 %v278, %v276
    %v327 = vpack.c.b16 %v281, %v279
    %v328 = vpack.c.b16 %v282, %v280
    %v329 = vpack.c.b16 %v285, %v283
    %v330 = vpack.c.b16 %v286, %v284
    %v331 = vpack.c.b16 %v289, %v287
    %v332 = vpack.c.b16 %v290, %v288
    %v333 = vpack.c.b16 %v293, %v291
    %v334 = vpack.c.b16 %v294, %v292
    %v335 = vpack.c.b16 %v297, %v295
    %v336 = vpack.c.b16 %v298, %v296
    %v337 = vpack.c.b16 %v301, %v299
    %v338 = vpack.c.b16 %v302, %v300
    %v339 = vpack.c.b16 %v305, %v303
    %v340 = vpack.c.b16 %v306, %v304
    %v341 = vpack.c.b16 %v309, %v307
    %v342 = vpack.c.b16 %v310, %v308
    %375 = vmatprep.subr.bf16.mxu0 %v326
    %376 = vmatpush1.bf16.msra.mxu0 %v325
    %377 = vmatprep.subr.bf16.mxu0 %v324
    %378 = vmatpush1.bf16.msra.mxu0 %v323
    %379 = vmatprep.subr.bf16.mxu0 %v322
    %380 = vmatpush1.bf16.msra.mxu0 %v321
    %381 = vmatprep.subr.bf16.mxu0 %v320
    %382 = vmatpush1.bf16.msra.mxu0 %v319
    %383 = vmatprep.subr.bf16.mxu0 %v318
    %384 = vmatpush1.bf16.msra.mxu0 %v317
    %385 = vmatprep.subr.bf16.mxu0 %v316
    %386 = vmatpush1.bf16.msra.mxu0 %v315
    %387 = vmatprep.subr.bf16.mxu0 %v314
    %388 = vmatpush1.bf16.msra.mxu0 %v313
    %389 = vmatprep.subr.bf16.mxu0 %v312
    %390 = vmatpush1.bf16.msra.mxu0 %v311
    %391 = vmatprep.subr.bf16.mxu0 %v342
    %392 = vmatpush2.bf16.msra.mxu0 %v341
    %393 = vmatprep.subr.bf16.mxu0 %v340
    %394 = vmatpush2.bf16.msra.mxu0 %v339
    %395 = vmatprep.subr.bf16.mxu0 %v338
    %396 = vmatpush2.bf16.msra.mxu0 %v337
    %397 = vmatprep.subr.bf16.mxu0 %v336
    %398 = vmatpush2.bf16.msra.mxu0 %v335
    %399 = vmatprep.subr.bf16.mxu0 %v334
    %400 = vmatpush2.bf16.msra.mxu0 %v333
    %401 = vmatprep.subr.bf16.mxu0 %v332
    %402 = vmatpush2.bf16.msra.mxu0 %v331
    %403 = vmatprep.subr.bf16.mxu0 %v330
    %404 = vmatpush2.bf16.msra.mxu0 %v329
    %405 = vmatprep.subr.bf16.mxu0 %v328
    %406 = vmatpush2.bf16.msra.mxu0 %v327
    %407 = vmatprep.mubr.bf16.mxu0 %v170
    %408 = vmatmul.mubr.bf16.gmra.mxu0 %v169
    %v409 = vpop.f32.mrf.mxu0
    %v410 = vadd.f32 %v208, %v409
    %v411 = vpop.f32.mrf.mxu0
    %v412 = vadd.f32 %v212, %v411
    %v413 = vpop.f32.mrf.mxu0
    %v414 = vpop.f32.mrf.mxu0
    %415 = vdwg.mxu0
    %v416 = vmax.f32 %v410, 0.0
    %v417 = vmax.f32 %v412, 0.0
    %v418 = vpack.c.bf16 %v416, %v416
    %v419 = vpack.c.bf16 %v417, %v417
    %v420 = vld [vmem:[#allocation8] sm:$0xf]
    %v421 = vld [vmem:[#allocation8 + $0x4] sm:$0xf]
    %v422 = vld [vmem:[#allocation8 + $0x8] sm:$0xf]
    %v423 = vld [vmem:[#allocation8 + $0xc] sm:$0xf]
    %v424 = vld [vmem:[#allocation8 + $0x10] sm:$0xf]
    %v425 = vld [vmem:[#allocation8 + $0x14] sm:$0xf]
    %v426 = vld [vmem:[#allocation8 + $0x18] sm:$0xf]
    %v427 = vld [vmem:[#allocation8 + $0x1c] sm:$0xf]
    %v428 = vld [vmem:[#allocation8 + $0x20] sm:$0xf]
    %v429 = vld [vmem:[#allocation8 + $0x24] sm:$0xf]
    %v430 = vld [vmem:[#allocation8 + $0x28] sm:$0xf]
    %v431 = vld [vmem:[#allocation8 + $0x2c] sm:$0xf]
    %v432 = vld [vmem:[#allocation8 + $0x30] sm:$0xf]
    %v433 = vld [vmem:[#allocation8 + $0x34] sm:$0xf]
    %v434 = vld [vmem:[#allocation8 + $0x38] sm:$0xf]
    %v435 = vld [vmem:[#allocation8 + $0x3c] sm:$0xf]
    %v436 = vld [vmem:[#allocation8 + $0x40] sm:$0xf]
    %v437 = vld [vmem:[#allocation8 + $0x44] sm:$0xf]
    %v438 = vld [vmem:[#allocation8 + $0x48] sm:$0xf]
    %v439 = vld [vmem:[#allocation8 + $0x4c] sm:$0xf]
    %v440 = vld [vmem:[#allocation8 + $0x50] sm:$0xf]
    %v441 = vld [vmem:[#allocation8 + $0x54] sm:$0xf]
    %v442 = vld [vmem:[#allocation8 + $0x58] sm:$0xf]
    %v443 = vld [vmem:[#allocation8 + $0x5c] sm:$0xf]
    %v444 = vld [vmem:[#allocation8 + $0x60] sm:$0xf]
    %v445 = vld [vmem:[#allocation8 + $0x64] sm:$0xf]
    %v446 = vld [vmem:[#allocation8 + $0x68] sm:$0xf]
    %v447 = vld [vmem:[#allocation8 + $0x6c] sm:$0xf]
    %v448 = vld [vmem:[#allocation8 + $0x70] sm:$0xf]
    %v449 = vld [vmem:[#allocation8 + $0x74] sm:$0xf]
    %v450 = vld [vmem:[#allocation8 + $0x78] sm:$0xf]
    %v451 = vld [vmem:[#allocation8 + $0x7c] sm:$0xf]
    %v452 = vld [vmem:[%s6] sm:$0x1]
    %v454 = vlaneseq
    %v455 = vshrl.u32 %v454, 7
    %v456 = vsub.s32 0, %v455
    %v457 = vrot.slane %v452, %v456
    %v491 = vunpack.c.l.b16 %v420
    %v492 = vunpack.c.l.b16 %v421
    %v493 = vunpack.c.l.b16 %v422
    %v494 = vunpack.c.l.b16 %v423
    %v495 = vunpack.c.l.b16 %v424
    %v496 = vunpack.c.l.b16 %v425
    %v497 = vunpack.c.l.b16 %v426
    %v498 = vunpack.c.l.b16 %v427
    %v499 = vunpack.c.l.b16 %v428
    %v500 = vunpack.c.l.b16 %v429
    %v501 = vunpack.c.l.b16 %v430
    %v502 = vunpack.c.l.b16 %v431
    %v503 = vunpack.c.l.b16 %v432
    %v504 = vunpack.c.l.b16 %v433
    %v505 = vunpack.c.l.b16 %v434
    %v506 = vunpack.c.l.b16 %v435
    %v507 = vunpack.c.l.b16 %v436
    %v508 = vunpack.c.l.b16 %v437
    %v509 = vunpack.c.l.b16 %v438
    %v510 = vunpack.c.l.b16 %v439
    %v511 = vunpack.c.l.b16 %v440
    %v512 = vunpack.c.l.b16 %v441
    %v513 = vunpack.c.l.b16 %v442
    %v514 = vunpack.c.l.b16 %v443
    %v515 = vunpack.c.l.b16 %v444
    %v516 = vunpack.c.l.b16 %v445
    %v517 = vunpack.c.l.b16 %v446
    %v518 = vunpack.c.l.b16 %v447
    %v519 = vunpack.c.l.b16 %v448
    %v520 = vunpack.c.l.b16 %v449
    %v521 = vunpack.c.l.b16 %v450
    %v522 = vunpack.c.l.b16 %v451
    %v523 = vpack.c.b16 %v492, %v491
    %v524 = vpack.c.b16 %v494, %v493
    %v525 = vpack.c.b16 %v496, %v495
    %v526 = vpack.c.b16 %v498, %v497
    %v527 = vpack.c.b16 %v500, %v499
    %v528 = vpack.c.b16 %v502, %v501
    %v529 = vpack.c.b16 %v504, %v503
    %v530 = vpack.c.b16 %v506, %v505
    %v531 = vpack.c.b16 %v508, %v507
    %v532 = vpack.c.b16 %v510, %v509
    %v533 = vpack.c.b16 %v512, %v511
    %v534 = vpack.c.b16 %v514, %v513
    %v535 = vpack.c.b16 %v516, %v515
    %v536 = vpack.c.b16 %v518, %v517
    %v537 = vpack.c.b16 %v520, %v519
    %v538 = vpack.c.b16 %v522, %v521
    %555 = vmatprep.subr.bf16.mxu0 0
    %556 = vmatpush1.bf16.msra.mxu0 %v530
    %557 = vmatprep.subr.bf16.mxu0 0
    %558 = vmatpush1.bf16.msra.mxu0 %v529
    %559 = vmatprep.subr.bf16.mxu0 0
    %560 = vmatpush1.bf16.msra.mxu0 %v528
    %561 = vmatprep.subr.bf16.mxu0 0
    %562 = vmatpush1.bf16.msra.mxu0 %v527
    %563 = vmatprep.subr.bf16.mxu0 0
    %564 = vmatpush1.bf16.msra.mxu0 %v526
    %565 = vmatprep.subr.bf16.mxu0 0
    %566 = vmatpush1.bf16.msra.mxu0 %v525
    %567 = vmatprep.subr.bf16.mxu0 0
    %568 = vmatpush1.bf16.msra.mxu0 %v524
    %569 = vmatprep.subr.bf16.mxu0 0
    %570 = vmatpush1.bf16.msra.mxu0 %v523
    %571 = vmatprep.subr.bf16.mxu0 0
    %572 = vmatpush2.bf16.msra.mxu0 %v538
    %573 = vmatprep.subr.bf16.mxu0 0
    %574 = vmatpush2.bf16.msra.mxu0 %v537
    %575 = vmatprep.subr.bf16.mxu0 0
    %576 = vmatpush2.bf16.msra.mxu0 %v536
    %577 = vmatprep.subr.bf16.mxu0 0
    %578 = vmatpush2.bf16.msra.mxu0 %v535
    %579 = vmatprep.subr.bf16.mxu0 0
    %580 = vmatpush2.bf16.msra.mxu0 %v534
    %581 = vmatprep.subr.bf16.mxu0 0
    %582 = vmatpush2.bf16.msra.mxu0 %v533
    %583 = vmatprep.subr.bf16.mxu0 0
    %584 = vmatpush2.bf16.msra.mxu0 %v532
    %585 = vmatprep.subr.bf16.mxu0 0
    %586 = vmatpush2.bf16.msra.mxu0 %v531
    %587 = vmatprep.mubr.bf16.mxu0 %v419
    %588 = vmatmul.mubr.bf16.gmra.mxu0 %v418
    %v589 = vpop.f32.mrf.mxu0
    %v590 = vadd.f32 %v457, %v589
    %v591 = vpop.f32.mrf.mxu0
    %v592 = vpop.f32.mrf.mxu0
    %v593 = vpop.f32.mrf.mxu0
    %594 = vdwg.mxu0
    %v595 = vtanh.pop %v590
    %v596 = vmul.f32 %v595, 3.5
    %v597 = vadd.f32 %v596, -1.5
    %v598 = vld [vmem:[%s7] sm:$0x1]
    %v599 = vsub.f32 %v597, %v590
    %v601 = vlaneseq
    %v602 = vshrl.u32 %v601, 7
    %v603 = vsub.s32 0, %v602
    %v604 = vrot.slane %v598, %v603
    %v606 = vmul.f32 %v604, %v599
    %v607 = vadd.f32 %v590, %v606
    %v608 = vpack.c.bf16 %v607, %v607
    %609 = vst [vmem:[#allocation10] sm:$0xf] %v608
    // Predicated region
    $region50: #{tpu_custom_call.1} parent=1 // pred_check
      _
    $region51: #{tpu_custom_call.1} parent=1 // pred_check_branch
      %611 = sbr.rel (0) target = $region53
    $region52: #{tpu_custom_call.1} parent=1 // pred_region
      %s613 = ssub.s32 64, 64
      %614 = vsyncadd [#allocation4], %s613
      %s616 = sshll.u32 [#allocation10], 4
      %s617 = int_to_ptr.vmem [resolvable:$true] %s616
      %619 = dma.vmem_to_hbm [thread:$0]  %s617, 64, %s8, [#allocation4]
    $region53: #{tpu_custom_call.1} parent=1 // pred_fallthru
      _
    // Predicated region
    $region54: #{tpu_custom_call.1} parent=1 // pred_check
      _
    $region55: #{tpu_custom_call.1} parent=1 // pred_check_branch
      %621 = sbr.rel (0) target = $region57
    $region56: #{tpu_custom_call.1} parent=1 // pred_region
      %622 = dma.done [#allocation4], 64
    $region57: #{tpu_custom_call.1} parent=1 // pred_fallthru
      _
    %623 = vsyncpa [#allocation3], 1
    %624 = vsyncpa [#allocation6], 1
    %625 = vsyncpa [#allocation9], 1
    %626 = vsyncpa [#allocation4], 1

</llo_original>
